<compile_context>
chip_gen: v6e
topology: v6e:2x2x1
jax: 0.10.0
libtpu: 0.0.40
codegen_flags: <defaults>
</compile_context>

<pallas_src>
import functools
import math

import jax
import jax.numpy as jnp
from jax.experimental import pallas as pl
from jax.experimental.pallas import tpu as pltpu

_LANES = 128


def _round_up(x: int, m: int) -> int:
    return ((x + m - 1) // m) * m


def _cdiv(a: int, b: int) -> int:
    return (a + b - 1) // b


def _lane_tile(x, reps: int):
    """Replicate a (rows, 128) lane-replicated stat across `reps` lane groups."""
    return x if reps == 1 else jnp.tile(x, (1, reps))


def _flash_attention_kernel(q_ref, k_ref, v_ref, o_ref,
                            q_sc, m_sc, l_sc, acc_sc, *,
                            scale: float, seq_k: int, block_k: int, dim_p: int,
                            mask_padding: bool, compute_dtype):
    kv = pl.program_id(1)
    last_kv = pl.num_programs(1) - 1

    @pl.when(kv == 0)
    def _init():
        # Scale Q (original-dim 1/sqrt(dim)) once per q tile and stage it in
        # the MXU operand dtype; interior kv steps reuse it.
        q_sc[...] = (q_ref[...].astype(jnp.float32) * scale).astype(compute_dtype)
        m_sc[...] = jnp.full_like(m_sc, -jnp.inf)
        l_sc[...] = jnp.zeros_like(l_sc)
        acc_sc[...] = jnp.zeros_like(acc_sc)

    q = q_sc[...]
    k = k_ref[...].astype(compute_dtype)
    v = v_ref[...].astype(compute_dtype)

    # scores = Q @ K^T, contracting the last dim of BOTH operands (no
    # materialized transpose); f32 accumulation on the MXU.
    s = jax.lax.dot_general(
        q, k,
        dimension_numbers=(((1,), (1,)), ((), ())),
        preferred_element_type=jnp.float32,
    )

    if mask_padding:
        # Padded key rows exist only in the last kv tile; skip the mask work
        # on interior tiles.
        def _mask(x):
            key_idx = kv * block_k + jax.lax.broadcasted_iota(jnp.int32, x.shape, 1)
            return jnp.where(key_idx < seq_k, x, -jnp.inf)

        s = jax.lax.cond(kv == last_kv, _mask, lambda x: x, s)

    # Online softmax with lane-replicated (block_q, 128) f32 statistics.
    m_prev = m_sc[...]
    l_prev = l_sc[...]
    m_curr = jnp.max(s, axis=-1, keepdims=True)            # (bq, 1)
    m_next = jnp.maximum(m_prev, m_curr)                   # (bq, 128)
    alpha = jnp.exp(m_prev - m_next)                        # (bq, 128)
    p = jnp.exp(s - _lane_tile(m_next, block_k // _LANES))  # (bq, bk)
    l_sc[...] = alpha * l_prev + jnp.sum(p, axis=-1, keepdims=True)
    acc_sc[...] = acc_sc[...] * _lane_tile(alpha, dim_p // _LANES) + jnp.dot(
        p.astype(compute_dtype), v, preferred_element_type=jnp.float32)
    m_sc[...] = m_next

    @pl.when(kv == last_kv)
    def _finalize():
        # EUP reciprocal (approx) — ~1e-3-level error, well under tolerance.
        inv_l = pl.reciprocal(l_sc[...], approx=True)
        o_ref[...] = (acc_sc[...] * _lane_tile(inv_l, dim_p // _LANES)).astype(o_ref.dtype)


def self_attention(Q: jax.Array, K: jax.Array, V: jax.Array, *,
                   max_block_q: int = 1024, max_block_k: int = 512,
                   mxu_dtype=None,
                   vmem_budget_bytes: int = 40 * 1024 * 1024) -> jax.Array:
    """Pallas TPU implementation of SelfAttention(dim).forward(Q, K, V)."""
    seq_q, dim = Q.shape
    seq_k, dim_k = K.shape
    assert dim == dim_k and V.shape == (seq_k, dim)
    assert seq_q >= 1 and seq_k >= 1

    in_dtype = jnp.dtype(Q.dtype)
    compute_dtype = jnp.dtype(mxu_dtype) if mxu_dtype is not None else in_dtype
    out_dtype = in_dtype

    scale = 1.0 / math.sqrt(dim)          # uses the ORIGINAL embedding dim

    # Sublane alignment depends on dtype packing: 8 (f32), 16 (bf16), 32 (8-bit).
    sub = max(8, 32 // min(in_dtype.itemsize, compute_dtype.itemsize))

    # Lane-dense feature dim (padded with zeros; scale uses the original dim so
    # the math is unchanged).
    # TODO(synk): for tiny per-head dims (e.g. 32) a multi-head-fused interface
    # would fill the 128 lanes with real data instead of zero padding.
    dim_p = _round_up(dim, _LANES)

    max_block_q = _round_up(max_block_q, sub)
    max_block_k = _round_up(max_block_k, _LANES)

    # --- q tile ---
    block_q = max_block_q if seq_q >= max_block_q else _round_up(seq_q, sub)
    # v7x megacore: prefer >= 2 q tiles whenever there is enough work to split
    # (harmless on single-TC v5e/v6e).
    if _cdiv(seq_q, block_q) == 1 and seq_q >= 2 * _LANES:
        block_q = _round_up(_cdiv(seq_q, 2), sub)
    # --- kv tile (multiple of 128 so lane-replicated stats broadcast cleanly) ---
    block_k = max_block_k if seq_k >= max_block_k else _round_up(seq_k, _LANES)

    # Keep double-buffered tiles + scratch comfortably inside VMEM on all gens.
    def _vmem_bytes(bq, bk):
        return (2 * bq * dim_p * in_dtype.itemsize         # Q (double buffered)
                + 2 * 2 * bk * dim_p * in_dtype.itemsize   # K, V
                + 2 * bq * dim_p * out_dtype.itemsize      # O
                + bq * dim_p * compute_dtype.itemsize      # scaled-Q scratch
                + bq * dim_p * 4                           # f32 accumulator
                + 2 * bq * _LANES * 4)                     # m, l stats

    while _vmem_bytes(block_q, block_k) > vmem_budget_bytes and block_q > 2 * _LANES:
        block_q = _round_up(block_q // 2, sub)
    while _vmem_bytes(block_q, block_k) > vmem_budget_bytes and block_k > _LANES:
        block_k = _round_up(block_k // 2, _LANES)

    seq_q_p = _round_up(seq_q, block_q)
    seq_k_p = _round_up(seq_k, block_k)
    mask_padding = seq_k_p != seq_k

    def _maybe_pad(x, rows, cols):
        if x.shape == (rows, cols):
            return x                       # no-op: avoid an extra HBM copy
        return jnp.pad(x, ((0, rows - x.shape[0]), (0, cols - x.shape[1])))

    Qp = _maybe_pad(Q, seq_q_p, dim_p)
    Kp = _maybe_pad(K, seq_k_p, dim_p)
    Vp = _maybe_pad(V, seq_k_p, dim_p)

    grid = (seq_q_p // block_q, seq_k_p // block_k)
    n_q_tiles = grid[0]

    kernel = functools.partial(
        _flash_attention_kernel,
        scale=scale, seq_k=seq_k, block_k=block_k, dim_p=dim_p,
        mask_padding=mask_padding, compute_dtype=compute_dtype)

    cost = pl.CostEstimate(
        flops=int(4 * seq_q_p * seq_k_p * dim_p),                 # QK^T + PV
        transcendentals=int(seq_q_p * seq_k_p),                   # exp
        bytes_accessed=int(
            seq_q_p * dim_p * in_dtype.itemsize                   # Q read once
            + 2 * n_q_tiles * seq_k_p * dim_p * in_dtype.itemsize # K,V per q tile
            + seq_q_p * dim_p * out_dtype.itemsize),              # output write
    )

    out_p = pl.pallas_call(
        kernel,
        out_shape=jax.ShapeDtypeStruct((seq_q_p, dim_p), out_dtype),
        grid_spec=pltpu.PrefetchScalarGridSpec(
            num_scalar_prefetch=0,
            grid=grid,
            in_specs=[
                pl.BlockSpec((block_q, dim_p), lambda i, j: (i, 0)),   # Q tile
                pl.BlockSpec((block_k, dim_p), lambda i, j: (j, 0)),   # K tile
                pl.BlockSpec((block_k, dim_p), lambda i, j: (j, 0)),   # V tile
            ],
            out_specs=pl.BlockSpec((block_q, dim_p), lambda i, j: (i, 0)),
            scratch_shapes=[
                pltpu.VMEM((block_q, dim_p), compute_dtype),   # scaled Q
                pltpu.VMEM((block_q, _LANES), jnp.float32),    # running max m
                pltpu.VMEM((block_q, _LANES), jnp.float32),    # running denom l
                pltpu.VMEM((block_q, dim_p), jnp.float32),     # f32 accumulator
            ],
        ),
        compiler_params=pltpu.CompilerParams(
            dimension_semantics=("parallel", "arbitrary"),
            vmem_limit_bytes=64 * 1024 * 1024,
        ),
        cost_estimate=cost,
    )(Qp, Kp, Vp)

    if (seq_q_p, dim_p) != (seq_q, dim):
        out_p = out_p[:seq_q, :dim]
    return out_p


def _reference(Q, K, V):
    dim = Q.shape[-1]
    scores = (Q.astype(jnp.float32) @ K.astype(jnp.float32).T) / math.sqrt(dim)
    p = jax.nn.softmax(scores, axis=-1)
    return p @ V.astype(jnp.float32)


if __name__ == "__main__":
    key = jax.random.PRNGKey(0)

    # SelfAttention(dim=32); Q, K, V are [seq, dim] token embeddings.
    seq, dim = 8, 32
    kq, kk, kv_ = jax.random.split(key, 3)
    Q = jax.random.normal(kq, (seq, dim), dtype=jnp.float32)
    K = jax.random.normal(kk, (seq, dim), dtype=jnp.float32)
    V = jax.random.normal(kv_, (seq, dim), dtype=jnp.float32)

    out = jax.block_until_ready(self_attention(Q, K, V))
    ref = _reference(Q, K, V)
    assert out.shape == (seq, dim)
    assert jnp.allclose(out, ref, atol=2e-3, rtol=2e-3), "mismatch vs reference"

    # Ragged, multi-q-tile (megacore split) and multi-kv-tile (last-tile mask) paths.
    for (sq, sk, d) in ((50, 37, 32), (512, 512, 64), (300, 700, 40)):
        k1, k2, k3, key = jax.random.split(key, 4)
        Q2 = jax.random.normal(k1, (sq, d), dtype=jnp.float32)
        K2 = jax.random.normal(k2, (sk, d), dtype=jnp.float32)
        V2 = jax.random.normal(k3, (sk, d), dtype=jnp.float32)
        out2 = jax.block_until_ready(self_attention(Q2, K2, V2))
        ref2 = _reference(Q2, K2, V2)
        assert out2.shape == (sq, d)
        assert jnp.allclose(out2, ref2, atol=2e-3, rtol=2e-3), "mismatch (tiled)"

    # Opt-in bf16 MXU operands (f32 accumulation) — deliberate numerics change.
    k1, k2, k3, key = jax.random.split(key, 4)
    Q3 = jax.random.normal(k1, (256, 64), dtype=jnp.float32)
    K3 = jax.random.normal(k2, (256, 64), dtype=jnp.float32)
    V3 = jax.random.normal(k3, (256, 64), dtype=jnp.float32)
    out3 = jax.block_until_ready(self_attention(Q3, K3, V3, mxu_dtype=jnp.bfloat16))
    ref3 = _reference(Q3, K3, V3)
    assert jnp.allclose(out3, ref3, atol=2e-2, rtol=2e-2), "mismatch (bf16 MXU)"

    # bf16 activations take the bf16 MXU path automatically.
    k1, k2, k3, key = jax.random.split(key, 4)
    Q4 = jax.random.normal(k1, (64, 32), dtype=jnp.bfloat16)
    K4 = jax.random.normal(k2, (64, 32), dtype=jnp.bfloat16)
    V4 = jax.random.normal(k3, (64, 32), dtype=jnp.bfloat16)
    out4 = jax.block_until_ready(self_attention(Q4, K4, V4))
    ref4 = _reference(Q4, K4, V4)
    assert out4.dtype == jnp.bfloat16
    assert jnp.allclose(out4.astype(jnp.float32), ref4, atol=3e-2, rtol=3e-2), \
        "mismatch (bf16 inputs)"

    print("KERNEL_OK")
</pallas_src>

<mosaic_0001>
module attributes {stable_mosaic.version = 11 : i64} {
  func.func @_flash_attention_kernel(%arg0: i32, %arg1: i32, %arg2: memref<8x128xf32, #tpu.memory_space<vmem>>, %arg3: memref<128x128xf32, #tpu.memory_space<vmem>>, %arg4: memref<128x128xf32, #tpu.memory_space<vmem>>, %arg5: memref<8x128xf32, #tpu.memory_space<vmem>>, %arg6: memref<8x128xf32, #tpu.memory_space<vmem>>, %arg7: memref<8x128xf32, #tpu.memory_space<vmem>>, %arg8: memref<8x128xf32, #tpu.memory_space<vmem>>, %arg9: memref<8x128xf32, #tpu.memory_space<vmem>>) attributes {dimension_semantics = [#tpu.dimension_semantics<parallel>, #tpu.dimension_semantics<arbitrary>], iteration_bounds = array<i64: 1, 1>, scalar_prefetch = 0 : i64, scratch_operands = 4 : i64, tpu.core_type = #tpu.core_type<tc>, window_params = [{transform_indices = @transform_0, window_bounds = array<i64: 8, 128>}, {transform_indices = @transform_1, window_bounds = array<i64: 128, 128>}, {transform_indices = @transform_2, window_bounds = array<i64: 128, 128>}, {transform_indices = @transform_3, window_bounds = array<i64: 8, 128>}]} {
    %c0_i32 = arith.constant 0 : i32
    %0 = arith.cmpi eq, %arg1, %c0_i32 : i32
    %1 = arith.extui %0 : i1 to i32
    %c0_i32_0 = arith.constant 0 : i32
    %2 = arith.cmpi ne, %1, %c0_i32_0 : i32
    scf.if %2 {
      %c0_25 = arith.constant 0 : index
      %c0_26 = arith.constant 0 : index
      %36 = vector.load %arg2[%c0_25, %c0_26] : memref<8x128xf32, #tpu.memory_space<vmem>>, vector<8x128xf32>
      %cst_27 = arith.constant 0.176776692 : f32
      %37 = vector.broadcast %cst_27 : f32 to vector<8x128xf32>
      %38 = arith.mulf %36, %37 : vector<8x128xf32>
      %c0_28 = arith.constant 0 : index
      %c0_29 = arith.constant 0 : index
      %39 = vector.load %arg6[%c0_28, %c0_29] : memref<8x128xf32, #tpu.memory_space<vmem>>, vector<8x128xf32>
      tpu.vector_store %arg6[%c0_28, %c0_29], %38 {strides = array<i32>} : memref<8x128xf32, #tpu.memory_space<vmem>>, vector<8x128xf32>,
      %cst_30 = arith.constant 0xFF800000 : f32
      %40 = vector.broadcast %cst_30 : f32 to vector<8x128xf32>
      %c0_31 = arith.constant 0 : index
      %c0_32 = arith.constant 0 : index
      %41 = vector.load %arg7[%c0_31, %c0_32] : memref<8x128xf32, #tpu.memory_space<vmem>>, vector<8x128xf32>
      tpu.vector_store %arg7[%c0_31, %c0_32], %40 {strides = array<i32>} : memref<8x128xf32, #tpu.memory_space<vmem>>, vector<8x128xf32>,
      %cst_33 = arith.constant 0.000000e+00 : f32
      %42 = vector.broadcast %cst_33 : f32 to vector<8x128xf32>
      %c0_34 = arith.constant 0 : index
      %c0_35 = arith.constant 0 : index
      %43 = vector.load %arg8[%c0_34, %c0_35] : memref<8x128xf32, #tpu.memory_space<vmem>>, vector<8x128xf32>
      tpu.vector_store %arg8[%c0_34, %c0_35], %42 {strides = array<i32>} : memref<8x128xf32, #tpu.memory_space<vmem>>, vector<8x128xf32>,
      %cst_36 = arith.constant 0.000000e+00 : f32
      %44 = vector.broadcast %cst_36 : f32 to vector<8x128xf32>
      %c0_37 = arith.constant 0 : index
      %c0_38 = arith.constant 0 : index
      %45 = vector.load %arg9[%c0_37, %c0_38] : memref<8x128xf32, #tpu.memory_space<vmem>>, vector<8x128xf32>
      tpu.vector_store %arg9[%c0_37, %c0_38], %44 {strides = array<i32>} : memref<8x128xf32, #tpu.memory_space<vmem>>, vector<8x128xf32>,
    } else {
    }
    %c0 = arith.constant 0 : index
    %c0_1 = arith.constant 0 : index
    %3 = vector.load %arg6[%c0, %c0_1] : memref<8x128xf32, #tpu.memory_space<vmem>>, vector<8x128xf32>
    %c0_2 = arith.constant 0 : index
    %c0_3 = arith.constant 0 : index
    %4 = vector.load %arg3[%c0_2, %c0_3] : memref<128x128xf32, #tpu.memory_space<vmem>>, vector<128x128xf32>
    %c0_4 = arith.constant 0 : index
    %c0_5 = arith.constant 0 : index
    %5 = vector.load %arg4[%c0_4, %c0_5] : memref<128x128xf32, #tpu.memory_space<vmem>>, vector<128x128xf32>
    %cst = arith.constant dense<0.000000e+00> : vector<8x128xf32>
    %6 = tpu.matmul %3, %4, %cst {dimension_numbers = #tpu.dot_dimension_numbers<[1], [1], [0], [0], [0, 0, 1, 0], [], []>} : vector<8x128xf32>, vector<128x128xf32>, vector<8x128xf32> -> vector<8x128xf32>
    %c0_i32_6 = arith.constant 0 : i32
    %7 = arith.cmpi eq, %arg1, %c0_i32_6 : i32
    %8 = arith.extui %7 : i1 to i32
    %c0_i32_7 = arith.constant 0 : i32
    %9 = arith.cmpi ne, %8, %c0_i32_7 : i32
    %10 = scf.if %9 -> (vector<8x128xf32>) {
      %c128_i32 = arith.constant 128 : i32
      %36 = arith.muli %arg1, %c128_i32 : i32
      %37 = tpu.iota {dimensions = array<i32: 1>} : vector<8x128xi32>
      %38 = vector.broadcast %36 : i32 to vector<8x128xi32>
      %39 = arith.addi %38, %37 : vector<8x128xi32>
      %c8_i32 = arith.constant 8 : i32
      %40 = vector.broadcast %c8_i32 : i32 to vector<8x128xi32>
      %41 = arith.cmpi slt, %39, %40 : vector<8x128xi32>
      %cst_25 = arith.constant 0xFF800000 : f32
      %42 = vector.broadcast %cst_25 : f32 to vector<8x128xf32>
      %43 = arith.select %41, %6, %42 : vector<8x128xi1>, vector<8x128xf32>
      scf.yield %43 : vector<8x128xf32>
    } else {
      scf.yield %6 : vector<8x128xf32>
    }
    %c0_8 = arith.constant 0 : index
    %c0_9 = arith.constant 0 : index
    %11 = vector.load %arg7[%c0_8, %c0_9] : memref<8x128xf32, #tpu.memory_space<vmem>>, vector<8x128xf32>
    %c0_10 = arith.constant 0 : index
    %c0_11 = arith.constant 0 : index
    %12 = vector.load %arg8[%c0_10, %c0_11] : memref<8x128xf32, #tpu.memory_space<vmem>>, vector<8x128xf32>
    %cst_12 = arith.constant dense<0xFF800000> : vector<8xf32>
    %13 = vector.multi_reduction <maximumf>, %10, %cst_12 [1] : vector<8x128xf32> to vector<8xf32>
    %14 = vector.shape_cast %13 : vector<8xf32> to vector<8x1xf32>
    %15 = vector.broadcast %14 : vector<8x1xf32> to vector<8x128xf32>
    %16 = arith.maximumf %11, %15 : vector<8x128xf32>
    %17 = arith.subf %11, %16 : vector<8x128xf32>
    %18 = math.exp %17 : vector<8x128xf32>
    %19 = arith.subf %10, %16 : vector<8x128xf32>
    %20 = math.exp %19 : vector<8x128xf32>
    %21 = arith.mulf %18, %12 : vector<8x128xf32>
    %cst_13 = arith.constant dense<0.000000e+00> : vector<8xf32>
    %22 = vector.multi_reduction <add>, %20, %cst_13 [1] : vector<8x128xf32> to vector<8xf32>
    %23 = vector.shape_cast %22 : vector<8xf32> to vector<8x1xf32>
    %24 = vector.broadcast %23 : vector<8x1xf32> to vector<8x128xf32>
    %25 = arith.addf %21, %24 : vector<8x128xf32>
    %c0_14 = arith.constant 0 : index
    %c0_15 = arith.constant 0 : index
    %26 = vector.load %arg8[%c0_14, %c0_15] : memref<8x128xf32, #tpu.memory_space<vmem>>, vector<8x128xf32>
    tpu.vector_store %arg8[%c0_14, %c0_15], %25 {strides = array<i32>} : memref<8x128xf32, #tpu.memory_space<vmem>>, vector<8x128xf32>,
    %c0_16 = arith.constant 0 : index
    %c0_17 = arith.constant 0 : index
    %27 = vector.load %arg9[%c0_16, %c0_17] : memref<8x128xf32, #tpu.memory_space<vmem>>, vector<8x128xf32>
    %28 = arith.mulf %27, %18 : vector<8x128xf32>
    %cst_18 = arith.constant dense<0.000000e+00> : vector<8x128xf32>
    %29 = tpu.matmul %20, %5, %cst_18 {dimension_numbers = #tpu.dot_dimension_numbers<[1], [0], [0], [1], [0, 0, 1, 1], [], []>} : vector<8x128xf32>, vector<128x128xf32>, vector<8x128xf32> -> vector<8x128xf32>
    %30 = arith.addf %28, %29 : vector<8x128xf32>
    %c0_19 = arith.constant 0 : index
    %c0_20 = arith.constant 0 : index
    %31 = vector.load %arg9[%c0_19, %c0_20] : memref<8x128xf32, #tpu.memory_space<vmem>>, vector<8x128xf32>
    tpu.vector_store %arg9[%c0_19, %c0_20], %30 {strides = array<i32>} : memref<8x128xf32, #tpu.memory_space<vmem>>, vector<8x128xf32>,
    %c0_21 = arith.constant 0 : index
    %c0_22 = arith.constant 0 : index
    %32 = vector.load %arg7[%c0_21, %c0_22] : memref<8x128xf32, #tpu.memory_space<vmem>>, vector<8x128xf32>
    tpu.vector_store %arg7[%c0_21, %c0_22], %16 {strides = array<i32>} : memref<8x128xf32, #tpu.memory_space<vmem>>, vector<8x128xf32>,
    %c0_i32_23 = arith.constant 0 : i32
    %33 = arith.cmpi eq, %arg1, %c0_i32_23 : i32
    %34 = arith.extui %33 : i1 to i32
    %c0_i32_24 = arith.constant 0 : i32
    %35 = arith.cmpi ne, %34, %c0_i32_24 : i32
    scf.if %35 {
      %c0_25 = arith.constant 0 : index
      %c0_26 = arith.constant 0 : index
      %36 = vector.load %arg8[%c0_25, %c0_26] : memref<8x128xf32, #tpu.memory_space<vmem>>, vector<8x128xf32>
      %37 = tpu.reciprocal %36 {approx = true} : vector<8x128xf32> -> vector<8x128xf32>
      %c0_27 = arith.constant 0 : index
      %c0_28 = arith.constant 0 : index
      %38 = vector.load %arg9[%c0_27, %c0_28] : memref<8x128xf32, #tpu.memory_space<vmem>>, vector<8x128xf32>
      %39 = arith.mulf %38, %37 : vector<8x128xf32>
      %c0_29 = arith.constant 0 : index
      %c0_30 = arith.constant 0 : index
      %40 = vector.load %arg5[%c0_29, %c0_30] : memref<8x128xf32, #tpu.memory_space<vmem>>, vector<8x128xf32>
      tpu.vector_store %arg5[%c0_29, %c0_30], %39 {strides = array<i32>} : memref<8x128xf32, #tpu.memory_space<vmem>>, vector<8x128xf32>,
    } else {
    }
    return
  }
  func.func @transform_0(%arg0: i32, %arg1: i32) -> (i32, i32) {
    %c0_i32 = arith.constant 0 : i32
    %c0_i32_0 = arith.constant 0 : i32
    return %arg0, %c0_i32 : i32, i32
  }
  func.func @transform_1(%arg0: i32, %arg1: i32) -> (i32, i32) {
    %c0_i32 = arith.constant 0 : i32
    %c0_i32_0 = arith.constant 0 : i32
    return %arg1, %c0_i32 : i32, i32
  }
  func.func @transform_2(%arg0: i32, %arg1: i32) -> (i32, i32) {
    %c0_i32 = arith.constant 0 : i32
    %c0_i32_0 = arith.constant 0 : i32
    return %arg1, %c0_i32 : i32, i32
  }
  func.func @transform_3(%arg0: i32, %arg1: i32) -> (i32, i32) {
    %c0_i32 = arith.constant 0 : i32
    %c0_i32_0 = arith.constant 0 : i32
    return %arg0, %c0_i32 : i32, i32
  }
}

</mosaic_0001>

<llo_original>
// kernel: tpu_custom_call.1
$region0: #{tpu_custom_call.1}
  #allocation0 [shape = 'u32[]', space=smem, size = 0x4, offset = 0x4, fixed_abs, tag = 'smem constant byte address 0x4 - core index']
  #allocation1 [shape = 'u32[144,128]{1,0:T(1,128)}', space=vmem, size = 0x12000, scoped, tag = 'internal scratch']
  #allocation2 [shape = 'f32[8,128]{1,0:T(8,128)}', space=vmem, size = 0x1000, scoped, tag = 'scratch operand']
  #allocation3 [shape = 'f32[8,128]{1,0:T(8,128)}', space=vmem, size = 0x1000, scoped, tag = 'scratch operand']
  #allocation4 [shape = 'f32[8,128]{1,0:T(8,128)}', space=vmem, size = 0x1000, scoped, tag = 'scratch operand']
  #allocation5 [shape = 'f32[8,128]{1,0:T(8,128)}', space=vmem, size = 0x1000, scoped, tag = 'scratch operand']
  %s0 = inlined_call_operand.hbm [shape: f32[8,128], index: 0, kind: input, shape index: {}]
  %s1 = inlined_call_operand.hbm [shape: f32[128,128], index: 1, kind: input, shape index: {}]
  %s2 = inlined_call_operand.hbm [shape: f32[128,128], index: 2, kind: input, shape index: {}]
  %s3 = inlined_call_operand.hbm [shape: f32[8,128], index: 3, kind: output, shape index: {}]
  %s4 = sld [smem:[#allocation0]]
  $region50: #{tpu_custom_call.1} parent=0
    _
  %s6 = ssub.s32 1, %s4
  %s7 = scalar_select 0, %s6, %s4
  $region1: #{tpu_custom_call.1} parent=0
    #allocation6 [shape = 'u8[4096]{0}', space=vmem, size = 0x1000, scoped, tag = 'input window, operand 0, single buffered']
    #allocation7 [shape = 's32[1]{0}', space=sflag, size = 0x4, scoped, tag = 'scoped memory for tpu_custom_call.1']
    #allocation8 [shape = 's32[1]{0}', space=sflag, size = 0x4, scoped, tag = 'scoped memory for tpu_custom_call.1']
    #allocation9 [shape = 'u8[65536]{0}', space=vmem, size = 0x10000, scoped, tag = 'input window, operand 1, single buffered']
    #allocation10 [shape = 's32[1]{0}', space=sflag, size = 0x4, scoped, tag = 'scoped memory for tpu_custom_call.1']
    #allocation11 [shape = 'u8[65536]{0}', space=vmem, size = 0x10000, scoped, tag = 'input window, operand 2, single buffered']
    #allocation12 [shape = 'u8[4096]{0}', space=vmem, size = 0x1000, scoped, tag = 'output window, operand 0, single buffered']
    %8 = vsyncpa [#allocation7], 0
    %9 = vsyncpa [#allocation10], 0
    %10 = vsyncpa [#allocation8], 0
    // Predicated region
    $region2: #{tpu_custom_call.1} parent=1 // pred_check
      _
    $region3: #{tpu_custom_call.1} parent=1 // pred_check_branch
      %12 = sbr.rel (0) target = $region5
    $region4: #{tpu_custom_call.1} parent=1 // pred_region
      %s14 = ssub.s32 128, 128
      %15 = vsyncadd [#allocation7], %s14
      %s17 = sshll.u32 [#allocation6], 4
      %s18 = int_to_ptr.vmem [resolvable:$true] %s17
      %20 = dma.hbm_to_vmem [thread:$0]  %s0, 128, %s18, [#allocation7]
    $region5: #{tpu_custom_call.1} parent=1 // pred_fallthru
      _
    // Predicated region
    $region6: #{tpu_custom_call.1} parent=1 // pred_check
      _
    $region7: #{tpu_custom_call.1} parent=1 // pred_check_branch
      %22 = sbr.rel (0) target = $region9
    $region8: #{tpu_custom_call.1} parent=1 // pred_region
      %s24 = ssub.s32 2048, 2048
      %25 = vsyncadd [#allocation10], %s24
      %s26 = sshll.u32 [#allocation9], 4
      %s27 = int_to_ptr.vmem [resolvable:$true] %s26
      %32 = dma.hbm_to_vmem [thread:$0]  %s1, 2048, %s27, [#allocation10], 128, 128, 8
    $region9: #{tpu_custom_call.1} parent=1 // pred_fallthru
      _
    // Predicated region
    $region10: #{tpu_custom_call.1} parent=1 // pred_check
      _
    $region11: #{tpu_custom_call.1} parent=1 // pred_check_branch
      %34 = sbr.rel (0) target = $region13
    $region12: #{tpu_custom_call.1} parent=1 // pred_region
      %s36 = ssub.s32 2048, 2048
      %37 = vsyncadd [#allocation10], %s36
      %s38 = sshll.u32 [#allocation11], 4
      %s39 = int_to_ptr.vmem [resolvable:$true] %s38
      %44 = dma.hbm_to_vmem [thread:$0]  %s2, 2048, %s39, [#allocation10], 128, 128, 8
    $region13: #{tpu_custom_call.1} parent=1 // pred_fallthru
      _
    // Predicated region
    $region14: #{tpu_custom_call.1} parent=1 // pred_check
      _
    $region15: #{tpu_custom_call.1} parent=1 // pred_check_branch
      %46 = sbr.rel (0) target = $region17
    $region16: #{tpu_custom_call.1} parent=1 // pred_region
      %47 = dma.done [#allocation7], 128
    $region17: #{tpu_custom_call.1} parent=1 // pred_fallthru
      _
    // Predicated region
    $region18: #{tpu_custom_call.1} parent=1 // pred_check
      _
    $region19: #{tpu_custom_call.1} parent=1 // pred_check_branch
      %49 = sbr.rel (0) target = $region21
    $region20: #{tpu_custom_call.1} parent=1 // pred_region
      %50 = dma.done [#allocation10], 2048
    $region21: #{tpu_custom_call.1} parent=1 // pred_fallthru
      _
    // Predicated region
    $region22: #{tpu_custom_call.1} parent=1 // pred_check
      _
    $region23: #{tpu_custom_call.1} parent=1 // pred_check_branch
      %52 = sbr.rel (0) target = $region25
    $region24: #{tpu_custom_call.1} parent=1 // pred_region
      %53 = dma.done [#allocation10], 2048
    $region25: #{tpu_custom_call.1} parent=1 // pred_fallthru
      _
    %p54 = scmp.eq.s32.totalorder 0, 0
    // Predicated region
    $region26: #{tpu_custom_call.1} parent=1 // pred_check
      %p55 = pneg %p54
    $region27: #{tpu_custom_call.1} parent=1 // pred_check_branch
      %57 = sbr.rel (%p55) target = $region29
    $region28: #{tpu_custom_call.1} parent=1 // pred_region
      %v58 = vld [vmem:[#allocation6] sm:$0xff]
      %v59 = vmul.f32 %v58, 0.17677669
      %60 = vst [vmem:[#allocation2] sm:$0xff] %v59
      %61 = vst [vmem:[#allocation3] sm:$0xff] -inf
      %62 = vst [vmem:[#allocation4] sm:$0xff] 0.0
      %63 = vst [vmem:[#allocation5] sm:$0xff] 0.0
    $region29: #{tpu_custom_call.1} parent=1 // pred_fallthru
      _
    %v64 = vld [vmem:[#allocation2] sm:$0xff]
    %v65 = vld [vmem:[#allocation9] sm:$0xff]
    %v66 = vld [vmem:[#allocation9 + $0x8] sm:$0xff]
    %v67 = vld [vmem:[#allocation9 + $0x10] sm:$0xff]
    %v68 = vld [vmem:[#allocation9 + $0x18] sm:$0xff]
    %v69 = vld [vmem:[#allocation9 + $0x20] sm:$0xff]
    %v70 = vld [vmem:[#allocation9 + $0x28] sm:$0xff]
    %v71 = vld [vmem:[#allocation9 + $0x30] sm:$0xff]
    %v72 = vld [vmem:[#allocation9 + $0x38] sm:$0xff]
    %v73 = vld [vmem:[#allocation9 + $0x40] sm:$0xff]
    %v74 = vld [vmem:[#allocation9 + $0x48] sm:$0xff]
    %v75 = vld [vmem:[#allocation9 + $0x50] sm:$0xff]
    %v76 = vld [vmem:[#allocation9 + $0x58] sm:$0xff]
    %v77 = vld [vmem:[#allocation9 + $0x60] sm:$0xff]
    %v78 = vld [vmem:[#allocation9 + $0x68] sm:$0xff]
    %v79 = vld [vmem:[#allocation9 + $0x70] sm:$0xff]
    %v80 = vld [vmem:[#allocation9 + $0x78] sm:$0xff]
    %v81 = vld [vmem:[#allocation11] sm:$0xff]
    %v82 = vld [vmem:[#allocation11 + $0x8] sm:$0xff]
    %v83 = vld [vmem:[#allocation11 + $0x10] sm:$0xff]
    %v84 = vld [vmem:[#allocation11 + $0x18] sm:$0xff]
    %v85 = vld [vmem:[#allocation11 + $0x20] sm:$0xff]
    %v86 = vld [vmem:[#allocation11 + $0x28] sm:$0xff]
    %v87 = vld [vmem:[#allocation11 + $0x30] sm:$0xff]
    %v88 = vld [vmem:[#allocation11 + $0x38] sm:$0xff]
    %v89 = vld [vmem:[#allocation11 + $0x40] sm:$0xff]
    %v90 = vld [vmem:[#allocation11 + $0x48] sm:$0xff]
    %v91 = vld [vmem:[#allocation11 + $0x50] sm:$0xff]
    %v92 = vld [vmem:[#allocation11 + $0x58] sm:$0xff]
    %v93 = vld [vmem:[#allocation11 + $0x60] sm:$0xff]
    %v94 = vld [vmem:[#allocation11 + $0x68] sm:$0xff]
    %v95 = vld [vmem:[#allocation11 + $0x70] sm:$0xff]
    %v96 = vld [vmem:[#allocation11 + $0x78] sm:$0xff]
    %97 = vmatprep.subr.mxu0 0.0
    %98 = vmatpush1.xpose.msra.mxu0 %v80
    %99 = vmatprep.subr.mxu0 0.0
    %100 = vmatpush1.xpose.msra.mxu0 %v79
    %101 = vmatprep.subr.mxu0 0.0
    %102 = vmatpush1.xpose.msra.mxu0 %v78
    %103 = vmatprep.subr.mxu0 0.0
    %104 = vmatpush1.xpose.msra.mxu0 %v77
    %105 = vmatprep.subr.mxu0 0.0
    %106 = vmatpush1.xpose.msra.mxu0 %v76
    %107 = vmatprep.subr.mxu0 0.0
    %108 = vmatpush1.xpose.msra.mxu0 %v75
    %109 = vmatprep.subr.mxu0 0.0
    %110 = vmatpush1.xpose.msra.mxu0 %v74
    %111 = vmatprep.subr.mxu0 0.0
    %112 = vmatpush1.xpose.msra.mxu0 %v73
    %113 = vmatprep.subr.mxu0 0.0
    %114 = vmatpush1.xpose.msra.mxu0 %v72
    %115 = vmatprep.subr.mxu0 0.0
    %116 = vmatpush1.xpose.msra.mxu0 %v71
    %117 = vmatprep.subr.mxu0 0.0
    %118 = vmatpush1.xpose.msra.mxu0 %v70
    %119 = vmatprep.subr.mxu0 0.0
    %120 = vmatpush1.xpose.msra.mxu0 %v69
    %121 = vmatprep.subr.mxu0 0.0
    %122 = vmatpush1.xpose.msra.mxu0 %v68
    %123 = vmatprep.subr.mxu0 0.0
    %124 = vmatpush1.xpose.msra.mxu0 %v67
    %125 = vmatprep.subr.mxu0 0.0
    %126 = vmatpush1.xpose.msra.mxu0 %v66
    %127 = vmatprep.subr.mxu0 0.0
    %128 = vmatpush1.xpose.msra.mxu0 %v65
    %129 = vmatprep.subr.mxu0 0.0
    %130 = vmatpush2.xpose.msra.mxu0 0.0
    %131 = vmatprep.subr.mxu0 0.0
    %132 = vmatpush2.xpose.msra.mxu0 0.0
    %133 = vmatprep.subr.mxu0 0.0
    %134 = vmatpush2.xpose.msra.mxu0 0.0
    %135 = vmatprep.subr.mxu0 0.0
    %136 = vmatpush2.xpose.msra.mxu0 0.0
    %137 = vmatprep.subr.mxu0 0.0
    %138 = vmatpush2.xpose.msra.mxu0 0.0
    %139 = vmatprep.subr.mxu0 0.0
    %140 = vmatpush2.xpose.msra.mxu0 0.0
    %141 = vmatprep.subr.mxu0 0.0
    %142 = vmatpush2.xpose.msra.mxu0 0.0
    %143 = vmatprep.subr.mxu0 0.0
    %144 = vmatpush2.xpose.msra.mxu0 0.0
    %145 = vmatprep.subr.mxu0 0.0
    %146 = vmatpush2.xpose.msra.mxu0 0.0
    %147 = vmatprep.subr.mxu0 0.0
    %148 = vmatpush2.xpose.msra.mxu0 0.0
    %149 = vmatprep.subr.mxu0 0.0
    %150 = vmatpush2.xpose.msra.mxu0 0.0
    %151 = vmatprep.subr.mxu0 0.0
    %152 = vmatpush2.xpose.msra.mxu0 0.0
    %153 = vmatprep.subr.mxu0 0.0
    %154 = vmatpush2.xpose.msra.mxu0 0.0
    %155 = vmatprep.subr.mxu0 0.0
    %156 = vmatpush2.xpose.msra.mxu0 0.0
    %157 = vmatprep.subr.mxu0 0.0
    %158 = vmatpush2.xpose.msra.mxu0 0.0
    %159 = vmatprep.subr.mxu0 0.0
    %160 = vmatpush2.xpose.msra.mxu0 0.0
    %161 = vmatprep.mubr.f32.mxu0 0.0
    %162 = vmatmul.mubr.f32.gmra.mxu0 %v64
    %v163 = vpop.f32.mrf.mxu0
    %v164 = vadd.f32 0.0, %v163
    %v165 = vpop.f32.mrf.mxu0
    %166 = vdwg.mxu0
    // Predicated region
    $region30: #{tpu_custom_call.1} parent=1 // pred_check
      %p167 = pneg %p54
    $region31: #{tpu_custom_call.1} parent=1 // pred_check_branch
      %169 = sbr.rel (%p167) target = $region33
    $region32: #{tpu_custom_call.1} parent=1 // pred_region
      %s170 = smul.u32 0, 128
      %v171 = vlaneseq
      %v172 = vand.u32 %v171, 127
      %v173 = vstv %s170
      %v174 = vadd.s32 %v173, %v172
      %vm175 = vcmp.lt.s32.totalorder %v174, 8
      %v176 = vsel %vm175, %v164, -inf
    $region33: #{tpu_custom_call.1} parent=1 // pred_fallthru
      %v177 = vphi 0, %v176
    %p178 = pneg %p54
    // Predicated region
    $region34: #{tpu_custom_call.1} parent=1 // pred_check
      _
    $region35: #{tpu_custom_call.1} parent=1 // pred_check_branch
      %180 = sbr.rel (%p54) target = $region37
    $region36: #{tpu_custom_call.1} parent=1 // pred_region
      _
    $region37: #{tpu_custom_call.1} parent=1 // pred_fallthru
      %v181 = vphi %v177, %v164
    %v182 = vld [vmem:[#allocation3] sm:$0xff]
    %v183 = vld [vmem:[#allocation4] sm:$0xff]
    %184 = vmax.xlane.f32.xlu0 %v181
    %v185 = vpop.xlane.xlu0 %184
    %v186 = vmax.f32 %v182, %v185
    %v187 = vsub.f32 %v182, %v186
    %v188 = vmul.f32 %v187, 1.442695
    %v189 = vpow.pop %v188
    %v190 = vsub.f32 %v181, %v186
    %v191 = vmul.f32 %v190, 1.442695
    %v192 = vpow.pop %v191
    %v193 = vmul.f32 %v189, %v183
    %194 = vadd.xlane.f32.xlu0 %v192
    %v195 = vpop.xlane.xlu0 %194
    %v196 = vadd.f32 %v193, %v195
    %197 = vst [vmem:[#allocation4] sm:$0xff] %v196
    %v198 = vld [vmem:[#allocation5] sm:$0xff]
    %v199 = vmul.f32 %v198, %v189
    %200 = vmatprep.subr.mxu0 0.0
    %201 = vmatpush1.msra.mxu0 %v96
    %202 = vmatprep.subr.mxu0 0.0
    %203 = vmatpush1.msra.mxu0 %v95
    %204 = vmatprep.subr.mxu0 0.0
    %205 = vmatpush1.msra.mxu0 %v94
    %206 = vmatprep.subr.mxu0 0.0
    %207 = vmatpush1.msra.mxu0 %v93
    %208 = vmatprep.subr.mxu0 0.0
    %209 = vmatpush1.msra.mxu0 %v92
    %210 = vmatprep.subr.mxu0 0.0
    %211 = vmatpush1.msra.mxu0 %v91
    %212 = vmatprep.subr.mxu0 0.0
    %213 = vmatpush1.msra.mxu0 %v90
    %214 = vmatprep.subr.mxu0 0.0
    %215 = vmatpush1.msra.mxu0 %v89
    %216 = vmatprep.subr.mxu0 0.0
    %217 = vmatpush1.msra.mxu0 %v88
    %218 = vmatprep.subr.mxu0 0.0
    %219 = vmatpush1.msra.mxu0 %v87
    %220 = vmatprep.subr.mxu0 0.0
    %221 = vmatpush1.msra.mxu0 %v86
    %222 = vmatprep.subr.mxu0 0.0
    %223 = vmatpush1.msra.mxu0 %v85
    %224 = vmatprep.subr.mxu0 0.0
    %225 = vmatpush1.msra.mxu0 %v84
    %226 = vmatprep.subr.mxu0 0.0
    %227 = vmatpush1.msra.mxu0 %v83
    %228 = vmatprep.subr.mxu0 0.0
    %229 = vmatpush1.msra.mxu0 %v82
    %230 = vmatprep.subr.mxu0 0.0
    %231 = vmatpush1.msra.mxu0 %v81
    %232 = vmatprep.subr.mxu0 0.0
    %233 = vmatpush2.msra.mxu0 0.0
    %234 = vmatprep.subr.mxu0 0.0
    %235 = vmatpush2.msra.mxu0 0.0
    %236 = vmatprep.subr.mxu0 0.0
    %237 = vmatpush2.msra.mxu0 0.0
    %238 = vmatprep.subr.mxu0 0.0
    %239 = vmatpush2.msra.mxu0 0.0
    %240 = vmatprep.subr.mxu0 0.0
    %241 = vmatpush2.msra.mxu0 0.0
    %242 = vmatprep.subr.mxu0 0.0
    %243 = vmatpush2.msra.mxu0 0.0
    %244 = vmatprep.subr.mxu0 0.0
    %245 = vmatpush2.msra.mxu0 0.0
    %246 = vmatprep.subr.mxu0 0.0
    %247 = vmatpush2.msra.mxu0 0.0
    %248 = vmatprep.subr.mxu0 0.0
    %249 = vmatpush2.msra.mxu0 0.0
    %250 = vmatprep.subr.mxu0 0.0
    %251 = vmatpush2.msra.mxu0 0.0
    %252 = vmatprep.subr.mxu0 0.0
    %253 = vmatpush2.msra.mxu0 0.0
    %254 = vmatprep.subr.mxu0 0.0
    %255 = vmatpush2.msra.mxu0 0.0
    %256 = vmatprep.subr.mxu0 0.0
    %257 = vmatpush2.msra.mxu0 0.0
    %258 = vmatprep.subr.mxu0 0.0
    %259 = vmatpush2.msra.mxu0 0.0
    %260 = vmatprep.subr.mxu0 0.0
    %261 = vmatpush2.msra.mxu0 0.0
    %262 = vmatprep.subr.mxu0 0.0
    %263 = vmatpush2.msra.mxu0 0.0
    %264 = vmatprep.mubr.f32.mxu0 0.0
    %265 = vmatmul.mubr.f32.gmra.mxu0 %v192
    %v266 = vpop.f32.mrf.mxu0
    %v267 = vadd.f32 0.0, %v266
    %v268 = vpop.f32.mrf.mxu0
    %269 = vdwg.mxu0
    %v270 = vadd.f32 %v199, %v267
    %271 = vst [vmem:[#allocation5] sm:$0xff] %v270
    %272 = vst [vmem:[#allocation3] sm:$0xff] %v186
    // Predicated region
    $region38: #{tpu_custom_call.1} parent=1 // pred_check
      %p273 = pneg %p54
    $region39: #{tpu_custom_call.1} parent=1 // pred_check_branch
      %275 = sbr.rel (%p273) target = $region41
    $region40: #{tpu_custom_call.1} parent=1 // pred_region
      %v276 = vld [vmem:[#allocation4] sm:$0xff]
      %v277 = vrcp.pop %v276
      %v278 = vld [vmem:[#allocation5] sm:$0xff]
      %v279 = vmul.f32 %v278, %v277
      %280 = vst [vmem:[#allocation12] sm:$0xff] %v279
    $region41: #{tpu_custom_call.1} parent=1 // pred_fallthru
      _
    // Predicated region
    $region42: #{tpu_custom_call.1} parent=1 // pred_check
      _
    $region43: #{tpu_custom_call.1} parent=1 // pred_check_branch
      %282 = sbr.rel (0) target = $region45
    $region44: #{tpu_custom_call.1} parent=1 // pred_region
      %s284 = ssub.s32 128, 128
      %285 = vsyncadd [#allocation8], %s284
      %s287 = sshll.u32 [#allocation12], 4
      %s288 = int_to_ptr.vmem [resolvable:$true] %s287
      %290 = dma.vmem_to_hbm [thread:$0]  %s288, 128, %s3, [#allocation8]
    $region45: #{tpu_custom_call.1} parent=1 // pred_fallthru
      _
    // Predicated region
    $region46: #{tpu_custom_call.1} parent=1 // pred_check
      _
    $region47: #{tpu_custom_call.1} parent=1 // pred_check_branch
      %292 = sbr.rel (0) target = $region49
    $region48: #{tpu_custom_call.1} parent=1 // pred_region
      %293 = dma.done [#allocation8], 128
    $region49: #{tpu_custom_call.1} parent=1 // pred_fallthru
      _
    %294 = vsyncpa [#allocation7], 1
    %295 = vsyncpa [#allocation10], 1
    %296 = vsyncpa [#allocation8], 1

</llo_original>
